<compile_context>
chip_gen: v5e
topology: v5e:2x2
jax: 0.10.0
libtpu: 0.0.40
codegen_flags: <defaults>
</compile_context>

<pallas_src>
import jax
import jax.numpy as jnp
from jax.experimental import pallas as pl
from jax.experimental.pallas import tpu as pltpu

_H1, _H2 = 64, 256


def _round_up(x, m):
    return ((x + m - 1) // m) * m


def _mlp_kernel(x_ref, w1_ref, b1_ref, w2_ref, b2_ref, w3_ref, b3_ref, o_ref):
    # Cast the streamed f32 activations to bf16 in-kernel (VPU has slack).
    x_bf = x_ref[...].astype(jnp.bfloat16)
    # Layer 1: bf16 MXU matmul, f32 accumulate, bias + ReLU.
    h1 = jnp.dot(x_bf, w1_ref[...], preferred_element_type=jnp.float32)
    h1 = jnp.maximum(h1 + b1_ref[...], 0.0)
    # Layer 2.
    h2 = jnp.dot(h1.astype(jnp.bfloat16), w2_ref[...],
                 preferred_element_type=jnp.float32)
    h2 = jnp.maximum(h2 + b2_ref[...], 0.0)
    # Layer 3 (no activation). Output written at its natural (unpadded) width.
    y = jnp.dot(h2.astype(jnp.bfloat16), w3_ref[...],
                preferred_element_type=jnp.float32) + b3_ref[...]
    o_ref[...] = y.astype(o_ref.dtype)


def prepare_params(params):
    """One-time weight prep: bf16 MXU weights, f32 row-vector biases."""
    w1, b1, w2, b2, w3, b3 = params
    return (
        w1.astype(jnp.bfloat16), b1.reshape(1, -1).astype(jnp.float32),
        w2.astype(jnp.bfloat16), b2.reshape(1, -1).astype(jnp.float32),
        w3.astype(jnp.bfloat16), b3.reshape(1, -1).astype(jnp.float32),
    )


def _vmem_footprint_bytes(tile, d_in, d_out):
    x_bufs = 2 * tile * d_in * 4          # double-buffered f32 input tiles
    o_bufs = 2 * tile * d_out * 4         # double-buffered f32 output tiles
    weights = (d_in * _H1 + _H1 * _H2 + _H2 * d_out) * 2 \
              + (_H1 + _H2 + d_out) * 4   # resident bf16 weights + f32 biases
    inter = tile * (_H1 + _H2 + d_out) * 4 \
            + tile * (_H1 + _H2 + d_in) * 2   # f32 intermediates + bf16 copies
    return x_bufs + o_bufs + weights + inter


def nnet_forward(x, prepared_params, *, tile_b=2048):
    """Fused Pallas forward. x: [B, D_in] f32; returns [B, D_out] f32."""
    w1_bf, b1r, w2_bf, b2r, w3_bf, b3r = prepared_params
    B, D_in = x.shape
    D_out = w3_bf.shape[1]

    # ---- batch tiling: big tiles, sublane-aligned; ragged tail via cdiv ----
    tile = min(int(tile_b), _round_up(B, 8))
    # Keep >=2 grid steps when the batch is large enough, so the "parallel"
    # batch axis actually shards across v7x's two TensorCores.
    if B >= 1024:
        tile = min(tile, _round_up(pl.cdiv(B, 2), 8))
    grid = (pl.cdiv(B, tile),)

    # ---- VMEM limit sized to the real footprint (2x slack), capped < 64 MiB
    est = _vmem_footprint_bytes(tile, D_in, D_out)
    vmem_limit = min(max(2 * est + (2 << 20), 16 << 20), 48 << 20)

    def resident(shape):
        # Full-array block, same block index every step -> fetched once,
        # stays VMEM-resident for the whole grid.
        return pl.BlockSpec(shape, lambda i: tuple(0 for _ in shape))

    flops = 2 * B * (D_in * _H1 + _H1 * _H2 + _H2 * D_out)
    bytes_accessed = (B * D_in * 4 + B * D_out * 4
                      + (D_in * _H1 + _H1 * _H2 + _H2 * D_out) * 2
                      + (_H1 + _H2 + D_out) * 4)

    out = pl.pallas_call(
        _mlp_kernel,
        out_shape=jax.ShapeDtypeStruct((B, D_out), jnp.float32),
        grid_spec=pltpu.PrefetchScalarGridSpec(
            num_scalar_prefetch=0,
            grid=grid,
            in_specs=[
                pl.BlockSpec((tile, D_in), lambda i: (i, 0)),  # streamed f32 x
                resident(w1_bf.shape),
                resident(b1r.shape),
                resident(w2_bf.shape),
                resident(b2r.shape),
                resident(w3_bf.shape),
                resident(b3r.shape),
            ],
            out_specs=pl.BlockSpec((tile, D_out), lambda i: (i, 0)),
        ),
        compiler_params=pltpu.CompilerParams(
            # Independent batch tiles -> megacore sharding on v7x.
            dimension_semantics=("parallel",),
            vmem_limit_bytes=int(vmem_limit),
        ),
        cost_estimate=pl.CostEstimate(
            flops=flops, transcendentals=0, bytes_accessed=bytes_accessed),
    )(x, w1_bf, b1r, w2_bf, b2r, w3_bf, b3r)

    return out


def init_params(key, input_dim, output_dim):
    """Deterministic init; weights stored as [in, out] (transpose of torch layout)."""
    ks = jax.random.split(key, 6)

    def lin(kw, kb, d_in, d_out):
        bound = 1.0 / jnp.sqrt(jnp.float32(d_in))
        w = jax.random.uniform(kw, (d_in, d_out), jnp.float32, -bound, bound)
        b = jax.random.uniform(kb, (d_out,), jnp.float32, -bound, bound)
        return w, b

    w1, b1 = lin(ks[0], ks[1], input_dim, _H1)
    w2, b2 = lin(ks[2], ks[3], _H1, _H2)
    w3, b3 = lin(ks[4], ks[5], _H2, output_dim)
    return (w1, b1, w2, b2, w3, b3)


def _reference(x, params):
    w1, b1, w2, b2, w3, b3 = params
    h = jnp.maximum(x @ w1 + b1, 0.0)
    h = jnp.maximum(h @ w2 + b2, 0.0)
    return h @ w3 + b3


if __name__ == "__main__":
    key = jax.random.PRNGKey(0)
    k_params, k_x1, k_x2 = jax.random.split(key, 3)

    input_dim, output_dim = 32, 16
    params = init_params(k_params, input_dim, output_dim)
    prepared = prepare_params(params)

    # Small primary check (single partial tile).
    batch = 8
    x = jax.random.normal(k_x1, (batch, input_dim), jnp.float32)
    out = jax.block_until_ready(nnet_forward(x, prepared))
    ref = _reference(x, params)
    assert out.shape == (batch, output_dim)
    assert jnp.allclose(out, ref, atol=5e-2, rtol=5e-2)

    # Ragged batch (not a multiple of the sublane/tile) to exercise masked
    # edge-block handling with no wrapper-side padding.
    batch2 = 300
    x2 = jax.random.normal(k_x2, (batch2, input_dim), jnp.float32)
    out2 = jax.block_until_ready(nnet_forward(x2, prepared))
    ref2 = _reference(x2, params)
    assert out2.shape == (batch2, output_dim)
    assert jnp.allclose(out2, ref2, atol=5e-2, rtol=5e-2)

    print("KERNEL_OK")
</pallas_src>

<mosaic_0001>
module attributes {stable_mosaic.version = 11 : i64} {
  func.func @_mlp_kernel(%arg0: i32, %arg1: memref<8x32xf32, #tpu.memory_space<vmem>>, %arg2: memref<32x64xbf16, #tpu.memory_space<vmem>>, %arg3: memref<1x64xf32, #tpu.memory_space<vmem>>, %arg4: memref<64x256xbf16, #tpu.memory_space<vmem>>, %arg5: memref<1x256xf32, #tpu.memory_space<vmem>>, %arg6: memref<256x16xbf16, #tpu.memory_space<vmem>>, %arg7: memref<1x16xf32, #tpu.memory_space<vmem>>, %arg8: memref<8x16xf32, #tpu.memory_space<vmem>>) attributes {dimension_semantics = [#tpu.dimension_semantics<parallel>], iteration_bounds = array<i64: 1>, scalar_prefetch = 0 : i64, scratch_operands = 0 : i64, tpu.core_type = #tpu.core_type<tc>, window_params = [{transform_indices = @transform_0, window_bounds = array<i64: 8, 32>}, {pipeline_mode = #tpu.pipeline_mode<synchronous>, transform_indices = @transform_1, window_bounds = array<i64: 32, 64>}, {pipeline_mode = #tpu.pipeline_mode<synchronous>, transform_indices = @transform_2, window_bounds = array<i64: 1, 64>}, {pipeline_mode = #tpu.pipeline_mode<synchronous>, transform_indices = @transform_3, window_bounds = array<i64: 64, 256>}, {pipeline_mode = #tpu.pipeline_mode<synchronous>, transform_indices = @transform_4, window_bounds = array<i64: 1, 256>}, {pipeline_mode = #tpu.pipeline_mode<synchronous>, transform_indices = @transform_5, window_bounds = array<i64: 256, 16>}, {pipeline_mode = #tpu.pipeline_mode<synchronous>, transform_indices = @transform_6, window_bounds = array<i64: 1, 16>}, {transform_indices = @transform_7, window_bounds = array<i64: 8, 16>}]} {
    %c0 = arith.constant 0 : index
    %c0_0 = arith.constant 0 : index
    %0 = vector.load %arg1[%c0, %c0_0] : memref<8x32xf32, #tpu.memory_space<vmem>>, vector<8x32xf32>
    %1 = arith.truncf %0 : vector<8x32xf32> to vector<8x32xbf16>
    %c0_1 = arith.constant 0 : index
    %c0_2 = arith.constant 0 : index
    %2 = vector.load %arg2[%c0_1, %c0_2] : memref<32x64xbf16, #tpu.memory_space<vmem>>, vector<32x64xbf16>
    %cst = arith.constant dense<0.000000e+00> : vector<8x64xf32>
    %3 = tpu.matmul %1, %2, %cst {dimension_numbers = #tpu.dot_dimension_numbers<[1], [0], [0], [1], [0, 0, 1, 1], [], []>} : vector<8x32xbf16>, vector<32x64xbf16>, vector<8x64xf32> -> vector<8x64xf32>
    %c0_3 = arith.constant 0 : index
    %c0_4 = arith.constant 0 : index
    %4 = vector.load %arg3[%c0_3, %c0_4] : memref<1x64xf32, #tpu.memory_space<vmem>>, vector<1x64xf32>
    %5 = vector.broadcast %4 : vector<1x64xf32> to vector<8x64xf32>
    %6 = arith.addf %3, %5 : vector<8x64xf32>
    %cst_5 = arith.constant 0.000000e+00 : f32
    %7 = vector.broadcast %cst_5 : f32 to vector<8x64xf32>
    %8 = arith.maximumf %6, %7 : vector<8x64xf32>
    %9 = arith.truncf %8 : vector<8x64xf32> to vector<8x64xbf16>
    %c0_6 = arith.constant 0 : index
    %c0_7 = arith.constant 0 : index
    %10 = vector.load %arg4[%c0_6, %c0_7] : memref<64x256xbf16, #tpu.memory_space<vmem>>, vector<64x256xbf16>
    %cst_8 = arith.constant dense<0.000000e+00> : vector<8x256xf32>
    %11 = tpu.matmul %9, %10, %cst_8 {dimension_numbers = #tpu.dot_dimension_numbers<[1], [0], [0], [1], [0, 0, 1, 1], [], []>} : vector<8x64xbf16>, vector<64x256xbf16>, vector<8x256xf32> -> vector<8x256xf32>
    %c0_9 = arith.constant 0 : index
    %c0_10 = arith.constant 0 : index
    %12 = vector.load %arg5[%c0_9, %c0_10] : memref<1x256xf32, #tpu.memory_space<vmem>>, vector<1x256xf32>
    %13 = vector.broadcast %12 : vector<1x256xf32> to vector<8x256xf32>
    %14 = arith.addf %11, %13 : vector<8x256xf32>
    %cst_11 = arith.constant 0.000000e+00 : f32
    %15 = vector.broadcast %cst_11 : f32 to vector<8x256xf32>
    %16 = arith.maximumf %14, %15 : vector<8x256xf32>
    %17 = arith.truncf %16 : vector<8x256xf32> to vector<8x256xbf16>
    %c0_12 = arith.constant 0 : index
    %c0_13 = arith.constant 0 : index
    %18 = vector.load %arg6[%c0_12, %c0_13] : memref<256x16xbf16, #tpu.memory_space<vmem>>, vector<256x16xbf16>
    %cst_14 = arith.constant dense<0.000000e+00> : vector<8x16xf32>
    %19 = tpu.matmul %17, %18, %cst_14 {dimension_numbers = #tpu.dot_dimension_numbers<[1], [0], [0], [1], [0, 0, 1, 1], [], []>} : vector<8x256xbf16>, vector<256x16xbf16>, vector<8x16xf32> -> vector<8x16xf32>
    %c0_15 = arith.constant 0 : index
    %c0_16 = arith.constant 0 : index
    %20 = vector.load %arg7[%c0_15, %c0_16] : memref<1x16xf32, #tpu.memory_space<vmem>>, vector<1x16xf32>
    %21 = vector.broadcast %20 : vector<1x16xf32> to vector<8x16xf32>
    %22 = arith.addf %19, %21 : vector<8x16xf32>
    %c0_17 = arith.constant 0 : index
    %c0_18 = arith.constant 0 : index
    %23 = vector.load %arg8[%c0_17, %c0_18] : memref<8x16xf32, #tpu.memory_space<vmem>>, vector<8x16xf32>
    tpu.vector_store %arg8[%c0_17, %c0_18], %22 {strides = array<i32>} : memref<8x16xf32, #tpu.memory_space<vmem>>, vector<8x16xf32>,
    return
  }
  func.func @transform_0(%arg0: i32) -> (i32, i32) {
    %c0_i32 = arith.constant 0 : i32
    %c0_i32_0 = arith.constant 0 : i32
    return %arg0, %c0_i32 : i32, i32
  }
  func.func @transform_1(%arg0: i32) -> (i32, i32) {
    %c0_i32 = arith.constant 0 : i32
    %c0_i32_0 = arith.constant 0 : i32
    %c0_i32_1 = arith.constant 0 : i32
    return %c0_i32, %c0_i32_0 : i32, i32
  }
  func.func @transform_2(%arg0: i32) -> (i32, i32) {
    %c0_i32 = arith.constant 0 : i32
    %c0_i32_0 = arith.constant 0 : i32
    %c0_i32_1 = arith.constant 0 : i32
    return %c0_i32, %c0_i32_0 : i32, i32
  }
  func.func @transform_3(%arg0: i32) -> (i32, i32) {
    %c0_i32 = arith.constant 0 : i32
    %c0_i32_0 = arith.constant 0 : i32
    %c0_i32_1 = arith.constant 0 : i32
    return %c0_i32, %c0_i32_0 : i32, i32
  }
  func.func @transform_4(%arg0: i32) -> (i32, i32) {
    %c0_i32 = arith.constant 0 : i32
    %c0_i32_0 = arith.constant 0 : i32
    %c0_i32_1 = arith.constant 0 : i32
    return %c0_i32, %c0_i32_0 : i32, i32
  }
  func.func @transform_5(%arg0: i32) -> (i32, i32) {
    %c0_i32 = arith.constant 0 : i32
    %c0_i32_0 = arith.constant 0 : i32
    %c0_i32_1 = arith.constant 0 : i32
    return %c0_i32, %c0_i32_0 : i32, i32
  }
  func.func @transform_6(%arg0: i32) -> (i32, i32) {
    %c0_i32 = arith.constant 0 : i32
    %c0_i32_0 = arith.constant 0 : i32
    %c0_i32_1 = arith.constant 0 : i32
    return %c0_i32, %c0_i32_0 : i32, i32
  }
  func.func @transform_7(%arg0: i32) -> (i32, i32) {
    %c0_i32 = arith.constant 0 : i32
    %c0_i32_0 = arith.constant 0 : i32
    return %arg0, %c0_i32 : i32, i32
  }
}

</mosaic_0001>

<llo_original>
// kernel: tpu_custom_call.1
$region0: #{tpu_custom_call.1}
  #allocation0 [shape = 'u32[]', space=smem, size = 0x4, offset = 0x4, fixed_abs, tag = 'smem constant byte address 0x4 - core index']
  #allocation1 [shape = 'u32[72,128]{1,0:T(1,128)}', space=vmem, size = 0x9000, scoped, tag = 'internal scratch']
  %s0 = inlined_call_operand.vmem [shape: f32[8,32], index: 0, kind: input, shape index: {}]
  %s1 = inlined_call_operand.vmem [shape: bf16[32,64], index: 1, kind: input, shape index: {}]
  %s2 = inlined_call_operand.vmem [shape: f32[1,64], index: 2, kind: input, shape index: {}]
  %s3 = inlined_call_operand.vmem [shape: bf16[64,256], index: 3, kind: input, shape index: {}]
  %s4 = inlined_call_operand.vmem [shape: f32[1,256], index: 4, kind: input, shape index: {}]
  %s5 = inlined_call_operand.vmem [shape: bf16[256,16], index: 5, kind: input, shape index: {}]
  %s6 = inlined_call_operand.vmem [shape: f32[1,16], index: 6, kind: input, shape index: {}]
  %s7 = inlined_call_operand.hbm [shape: f32[8,16], index: 7, kind: output, shape index: {}]
  %s8 = sld [smem:[#allocation0]]
  $region38: #{tpu_custom_call.1} parent=0
    _
  %s10 = ssub.s32 1, %s8
  %s11 = scalar_select 0, %s10, %s8
  $region1: #{tpu_custom_call.1} parent=0
    #allocation2 [shape = 'u8[4096]{0}', space=vmem, size = 0x1000, scoped, tag = 'output window, operand 0, single buffered']
    #allocation3 [shape = 's32[1]{0}', space=sflag, size = 0x4, scoped, tag = 'scoped memory for tpu_custom_call.1']
    %12 = vsyncpa [#allocation3], 0
    // Predicated region
    $region2: #{tpu_custom_call.1} parent=1 // pred_check
      _
    $region3: #{tpu_custom_call.1} parent=1 // pred_check_branch
      %14 = sbr.rel (0) target = $region5
    $region4: #{tpu_custom_call.1} parent=1 // pred_region
      _
    $region5: #{tpu_custom_call.1} parent=1 // pred_fallthru
      _
    // Predicated region
    $region6: #{tpu_custom_call.1} parent=1 // pred_check
      _
    $region7: #{tpu_custom_call.1} parent=1 // pred_check_branch
      %16 = sbr.rel (0) target = $region9
    $region8: #{tpu_custom_call.1} parent=1 // pred_region
      _
    $region9: #{tpu_custom_call.1} parent=1 // pred_fallthru
      _
    // Predicated region
    $region10: #{tpu_custom_call.1} parent=1 // pred_check
      _
    $region11: #{tpu_custom_call.1} parent=1 // pred_check_branch
      %18 = sbr.rel (0) target = $region13
    $region12: #{tpu_custom_call.1} parent=1 // pred_region
      _
    $region13: #{tpu_custom_call.1} parent=1 // pred_fallthru
      _
    // Predicated region
    $region14: #{tpu_custom_call.1} parent=1 // pred_check
      _
    $region15: #{tpu_custom_call.1} parent=1 // pred_check_branch
      %20 = sbr.rel (0) target = $region17
    $region16: #{tpu_custom_call.1} parent=1 // pred_region
      _
    $region17: #{tpu_custom_call.1} parent=1 // pred_fallthru
      _
    // Predicated region
    $region18: #{tpu_custom_call.1} parent=1 // pred_check
      _
    $region19: #{tpu_custom_call.1} parent=1 // pred_check_branch
      %22 = sbr.rel (0) target = $region21
    $region20: #{tpu_custom_call.1} parent=1 // pred_region
      _
    $region21: #{tpu_custom_call.1} parent=1 // pred_fallthru
      _
    // Predicated region
    $region22: #{tpu_custom_call.1} parent=1 // pred_check
      _
    $region23: #{tpu_custom_call.1} parent=1 // pred_check_branch
      %24 = sbr.rel (0) target = $region25
    $region24: #{tpu_custom_call.1} parent=1 // pred_region
      _
    $region25: #{tpu_custom_call.1} parent=1 // pred_fallthru
      _
    // Predicated region
    $region26: #{tpu_custom_call.1} parent=1 // pred_check
      _
    $region27: #{tpu_custom_call.1} parent=1 // pred_check_branch
      %26 = sbr.rel (0) target = $region29
    $region28: #{tpu_custom_call.1} parent=1 // pred_region
      _
    $region29: #{tpu_custom_call.1} parent=1 // pred_fallthru
      _
    %v28 = vld [vmem:[%s0] sm:$0xff]
    %v29 = vpack.c.bf16 %v28, %v28
    %v30 = vld [vmem:[%s1] sm:$0xf]
    %v31 = vld [vmem:[%s1 + $0x4] sm:$0xf]
    %v32 = vld [vmem:[%s1 + $0x8] sm:$0xf]
    %v33 = vld [vmem:[%s1 + $0xc] sm:$0xf]
    %v34 = vld [vmem:[%s2] sm:$0x1]
    %v36 = vperm.slane %v34, 0
    %v42 = vunpack.c.l.b16 %v30
    %v43 = vunpack.c.l.b16 %v31
    %v44 = vunpack.c.l.b16 %v32
    %v45 = vunpack.c.l.b16 %v33
    %v46 = vpack.c.b16 %v43, %v42
    %v47 = vpack.c.b16 %v45, %v44
    %vm50 = vcmask 261120
    %v52 = vsel %vm50, %v29, 0
    %54 = vmatpush.bf16.msra.mxu0 0
    %55 = vmatpush.bf16.msra.mxu0 0
    %56 = vmatpush.bf16.msra.mxu0 0
    %57 = vmatpush.bf16.msra.mxu0 0
    %58 = vmatpush.bf16.msra.mxu0 0
    %59 = vmatpush.bf16.msra.mxu0 0
    %60 = vmatpush.bf16.msra.mxu0 %v47
    %61 = vmatpush.bf16.msra.mxu0 %v46
    %62 = vmatmul.bf16.gmra.mxu0 %v52
    %v63 = vpop.f32.mrf.mxu0
    %v64 = vadd.f32 %v36, %v63
    %v65 = vpop.f32.mrf.mxu0
    %66 = vdwg.mxu0
    %v67 = vmax.f32 %v64, 0.0
    %v68 = vpack.c.bf16 %v67, %v67
    %v69 = vld [vmem:[%s3] sm:$0xff]
    %v70 = vld [vmem:[%s3 + $0x8] sm:$0xff]
    %v71 = vld [vmem:[%s3 + $0x10] sm:$0xff]
    %v72 = vld [vmem:[%s3 + $0x18] sm:$0xff]
    %v73 = vld [vmem:[%s3 + $0x20] sm:$0xff]
    %v74 = vld [vmem:[%s3 + $0x28] sm:$0xff]
    %v75 = vld [vmem:[%s3 + $0x30] sm:$0xff]
    %v76 = vld [vmem:[%s3 + $0x38] sm:$0xff]
    %v77 = vld [vmem:[%s4] sm:$0x3]
    %v79 = vperm.slane %v77, 0
    %v80 = vperm.slane %v77, 1
    %v91 = vunpack.c.l.b16 %v69
    %v92 = vunpack.c.h.b16 %v69
    %v93 = vunpack.c.l.b16 %v70
    %v94 = vunpack.c.h.b16 %v70
    %v95 = vunpack.c.l.b16 %v71
    %v96 = vunpack.c.h.b16 %v71
    %v97 = vunpack.c.l.b16 %v72
    %v98 = vunpack.c.h.b16 %v72
    %v99 = vunpack.c.l.b16 %v73
    %v100 = vunpack.c.h.b16 %v73
    %v101 = vunpack.c.l.b16 %v74
    %v102 = vunpack.c.h.b16 %v74
    %v103 = vunpack.c.l.b16 %v75
    %v104 = vunpack.c.h.b16 %v75
    %v105 = vunpack.c.l.b16 %v76
    %v106 = vunpack.c.h.b16 %v76
    %v107 = vpack.c.b16 %v93, %v91
    %v108 = vpack.c.b16 %v94, %v92
    %v109 = vpack.c.b16 %v97, %v95
    %v110 = vpack.c.b16 %v98, %v96
    %v111 = vpack.c.b16 %v101, %v99
    %v112 = vpack.c.b16 %v102, %v100
    %v113 = vpack.c.b16 %v105, %v103
    %v114 = vpack.c.b16 %v106, %v104
    %vm123 = vcmask 523264
    %v125 = vsel %vm123, %v68, 0
    %127 = vmatpush.bf16.msra.mxu0 0
    %128 = vmatpush.bf16.msra.mxu0 0
    %129 = vmatpush.bf16.msra.mxu0 0
    %130 = vmatpush.bf16.msra.mxu0 0
    %131 = vmatpush.bf16.msra.mxu0 %v113
    %132 = vmatpush.bf16.msra.mxu0 %v111
    %133 = vmatpush.bf16.msra.mxu0 %v109
    %134 = vmatpush.bf16.msra.mxu0 %v107
    %135 = vmatmul.bf16.gmra.mxu0 %v125
    %v136 = vpop.f32.mrf.mxu0
    %v137 = vadd.f32 %v79, %v136
    %v138 = vpop.f32.mrf.mxu0
    %139 = vdwg.mxu0
    %140 = vmatpush.bf16.msra.mxu0 0
    %141 = vmatpush.bf16.msra.mxu0 0
    %142 = vmatpush.bf16.msra.mxu0 0
    %143 = vmatpush.bf16.msra.mxu0 0
    %144 = vmatpush.bf16.msra.mxu0 %v114
    %145 = vmatpush.bf16.msra.mxu0 %v112
    %146 = vmatpush.bf16.msra.mxu0 %v110
    %147 = vmatpush.bf16.msra.mxu0 %v108
    %148 = vmatmul.bf16.gmra.mxu0 %v125
    %v149 = vpop.f32.mrf.mxu0
    %v150 = vadd.f32 %v80, %v149
    %v151 = vpop.f32.mrf.mxu0
    %152 = vdwg.mxu0
    %v153 = vmax.f32 %v137, 0.0
    %v154 = vmax.f32 %v150, 0.0
    %v155 = vpack.c.bf16 %v153, %v153
    %v156 = vpack.c.bf16 %v154, %v154
    %v157 = vld [vmem:[%s5] sm:$0xf]
    %v158 = vld [vmem:[%s5 + $0x4] sm:$0xf]
    %v159 = vld [vmem:[%s5 + $0x8] sm:$0xf]
    %v160 = vld [vmem:[%s5 + $0xc] sm:$0xf]
    %v161 = vld [vmem:[%s5 + $0x10] sm:$0xf]
    %v162 = vld [vmem:[%s5 + $0x14] sm:$0xf]
    %v163 = vld [vmem:[%s5 + $0x18] sm:$0xf]
    %v164 = vld [vmem:[%s5 + $0x1c] sm:$0xf]
    %v165 = vld [vmem:[%s5 + $0x20] sm:$0xf]
    %v166 = vld [vmem:[%s5 + $0x24] sm:$0xf]
    %v167 = vld [vmem:[%s5 + $0x28] sm:$0xf]
    %v168 = vld [vmem:[%s5 + $0x2c] sm:$0xf]
    %v169 = vld [vmem:[%s5 + $0x30] sm:$0xf]
    %v170 = vld [vmem:[%s5 + $0x34] sm:$0xf]
    %v171 = vld [vmem:[%s5 + $0x38] sm:$0xf]
    %v172 = vld [vmem:[%s5 + $0x3c] sm:$0xf]
    %v173 = vld [vmem:[%s5 + $0x40] sm:$0xf]
    %v174 = vld [vmem:[%s5 + $0x44] sm:$0xf]
    %v175 = vld [vmem:[%s5 + $0x48] sm:$0xf]
    %v176 = vld [vmem:[%s5 + $0x4c] sm:$0xf]
    %v177 = vld [vmem:[%s5 + $0x50] sm:$0xf]
    %v178 = vld [vmem:[%s5 + $0x54] sm:$0xf]
    %v179 = vld [vmem:[%s5 + $0x58] sm:$0xf]
    %v180 = vld [vmem:[%s5 + $0x5c] sm:$0xf]
    %v181 = vld [vmem:[%s5 + $0x60] sm:$0xf]
    %v182 = vld [vmem:[%s5 + $0x64] sm:$0xf]
    %v183 = vld [vmem:[%s5 + $0x68] sm:$0xf]
    %v184 = vld [vmem:[%s5 + $0x6c] sm:$0xf]
    %v185 = vld [vmem:[%s5 + $0x70] sm:$0xf]
    %v186 = vld [vmem:[%s5 + $0x74] sm:$0xf]
    %v187 = vld [vmem:[%s5 + $0x78] sm:$0xf]
    %v188 = vld [vmem:[%s5 + $0x7c] sm:$0xf]
    %v189 = vld [vmem:[%s6] sm:$0x1]
    %v191 = vperm.slane %v189, 0
    %v225 = vunpack.c.l.b16 %v157
    %v226 = vunpack.c.l.b16 %v158
    %v227 = vunpack.c.l.b16 %v159
    %v228 = vunpack.c.l.b16 %v160
    %v229 = vunpack.c.l.b16 %v161
    %v230 = vunpack.c.l.b16 %v162
    %v231 = vunpack.c.l.b16 %v163
    %v232 = vunpack.c.l.b16 %v164
    %v233 = vunpack.c.l.b16 %v165
    %v234 = vunpack.c.l.b16 %v166
    %v235 = vunpack.c.l.b16 %v167
    %v236 = vunpack.c.l.b16 %v168
    %v237 = vunpack.c.l.b16 %v169
    %v238 = vunpack.c.l.b16 %v170
    %v239 = vunpack.c.l.b16 %v171
    %v240 = vunpack.c.l.b16 %v172
    %v241 = vunpack.c.l.b16 %v173
    %v242 = vunpack.c.l.b16 %v174
    %v243 = vunpack.c.l.b16 %v175
    %v244 = vunpack.c.l.b16 %v176
    %v245 = vunpack.c.l.b16 %v177
    %v246 = vunpack.c.l.b16 %v178
    %v247 = vunpack.c.l.b16 %v179
    %v248 = vunpack.c.l.b16 %v180
    %v249 = vunpack.c.l.b16 %v181
    %v250 = vunpack.c.l.b16 %v182
    %v251 = vunpack.c.l.b16 %v183
    %v252 = vunpack.c.l.b16 %v184
    %v253 = vunpack.c.l.b16 %v185
    %v254 = vunpack.c.l.b16 %v186
    %v255 = vunpack.c.l.b16 %v187
    %v256 = vunpack.c.l.b16 %v188
    %v257 = vpack.c.b16 %v226, %v225
    %v258 = vpack.c.b16 %v228, %v227
    %v259 = vpack.c.b16 %v230, %v229
    %v260 = vpack.c.b16 %v232, %v231
    %v261 = vpack.c.b16 %v234, %v233
    %v262 = vpack.c.b16 %v236, %v235
    %v263 = vpack.c.b16 %v238, %v237
    %v264 = vpack.c.b16 %v240, %v239
    %v265 = vpack.c.b16 %v242, %v241
    %v266 = vpack.c.b16 %v244, %v243
    %v267 = vpack.c.b16 %v246, %v245
    %v268 = vpack.c.b16 %v248, %v247
    %v269 = vpack.c.b16 %v250, %v249
    %v270 = vpack.c.b16 %v252, %v251
    %v271 = vpack.c.b16 %v254, %v253
    %v272 = vpack.c.b16 %v256, %v255
    %289 = vmatpush.bf16.msra.mxu0 %v264
    %290 = vmatpush.bf16.msra.mxu0 %v263
    %291 = vmatpush.bf16.msra.mxu0 %v262
    %292 = vmatpush.bf16.msra.mxu0 %v261
    %293 = vmatpush.bf16.msra.mxu0 %v260
    %294 = vmatpush.bf16.msra.mxu0 %v259
    %295 = vmatpush.bf16.msra.mxu0 %v258
    %296 = vmatpush.bf16.msra.mxu0 %v257
    %297 = vmatmul.bf16.gmra.mxu0 %v155
    %v298 = vpop.f32.mrf.mxu0
    %v299 = vadd.f32 %v191, %v298
    %v300 = vpop.f32.mrf.mxu0
    %301 = vdwg.mxu0
    %302 = vmatpush.bf16.msra.mxu0 %v272
    %303 = vmatpush.bf16.msra.mxu0 %v271
    %304 = vmatpush.bf16.msra.mxu0 %v270
    %305 = vmatpush.bf16.msra.mxu0 %v269
    %306 = vmatpush.bf16.msra.mxu0 %v268
    %307 = vmatpush.bf16.msra.mxu0 %v267
    %308 = vmatpush.bf16.msra.mxu0 %v266
    %309 = vmatpush.bf16.msra.mxu0 %v265
    %310 = vmatmul.bf16.gmra.mxu0 %v156
    %v311 = vpop.f32.mrf.mxu0
    %v312 = vadd.f32 %v299, %v311
    %v313 = vpop.f32.mrf.mxu0
    %314 = vdwg.mxu0
    %vm315 = vcmask 130048
    %316 = vst.msk [vmem:[#allocation2] sm:$0xff] %vm315, %v312
    // Predicated region
    $region30: #{tpu_custom_call.1} parent=1 // pred_check
      _
    $region31: #{tpu_custom_call.1} parent=1 // pred_check_branch
      %318 = sbr.rel (0) target = $region33
    $region32: #{tpu_custom_call.1} parent=1 // pred_region
      %320 = vsyncadd [#allocation3], 0
      %s322 = sshll.u32 [#allocation2], 4
      %s323 = int_to_ptr.vmem [resolvable:$true] %s322
      %s324 = sshll.u32 %s7, 4
      %s325 = int_to_ptr.hbm [resolvable:$true] %s324
      %327 = dma.vmem_to_hbm [thread:$0]  %s323, 128, %s325, [#allocation3]
    $region33: #{tpu_custom_call.1} parent=1 // pred_fallthru
      _
    // Predicated region
    $region34: #{tpu_custom_call.1} parent=1 // pred_check
      _
    $region35: #{tpu_custom_call.1} parent=1 // pred_check_branch
      %329 = sbr.rel (0) target = $region37
    $region36: #{tpu_custom_call.1} parent=1 // pred_region
      %331 = dma.done [#allocation3], 128
    $region37: #{tpu_custom_call.1} parent=1 // pred_fallthru
      _
    %332 = vsyncpa [#allocation3], 1

</llo_original>
